<compile_context>
chip_gen: v5e
topology: v5e:2x2
jax: 0.10.0
libtpu: 0.0.40
codegen_flags: <defaults>
</compile_context>

<pallas_src>
import math

import jax
import jax.numpy as jnp
from jax.experimental import pallas as pl
from jax.experimental.pallas import tpu as pltpu

# ---- model config (small, consistent with the module) ----
D_MODEL = 32
NHEAD = 4
HEAD_DIM = D_MODEL // NHEAD
DIM_FF = 64
SEQ = 8
BATCH = 2


def encoder_layer_kernel(x_ref, wqkv_ref, bqkv_ref, wo_ref, bias_ref,
                         w1_ref, w2_ref, alpha_ref, o_ref):
    bs = x_ref.shape[0]                    # S*B rows, seq-major flat layout
    x = x_ref[...].astype(jnp.float32)     # (S*B, E)
    x_bf = x.astype(jnp.bfloat16)
    alpha = alpha_ref[0]                   # scalar, read from SMEM

    # ---- fused in-projection [q | k | v]: bf16 operands, f32 accumulation ---
    qkv = jnp.dot(x_bf, wqkv_ref[...],
                  preferred_element_type=jnp.float32) + bqkv_ref[...]
    qkv_bf = qkv.astype(jnp.bfloat16)

    # packed small biases: [bo(E) | b1(DIM_FF) | b2(E)] -> (1, 128)
    bias = bias_ref[...]
    bo = bias[:, :D_MODEL]
    b1 = bias[:, D_MODEL:D_MODEL + DIM_FF]
    b2 = bias[:, D_MODEL + DIM_FF:]

    # Block-diagonal mask in the seq-major flat layout: row r = (s, b) with
    # r = s*B + b, so a row may only attend to columns with the same r % B.
    row_b = jax.lax.broadcasted_iota(jnp.int32, (bs, bs), 0) % BATCH
    col_b = jax.lax.broadcasted_iota(jnp.int32, (bs, bs), 1) % BATCH
    same_batch = row_b == col_b

    # ---- per-head operand extraction, hoisted out of the softmax math -------
    qs, ks, vs = [], [], []
    for h in range(NHEAD):
        lo = h * HEAD_DIM
        qs.append(qkv_bf[:, lo:lo + HEAD_DIM])
        ks.append(qkv_bf[:, D_MODEL + lo:D_MODEL + lo + HEAD_DIM])
        vs.append(qkv_bf[:, 2 * D_MODEL + lo:2 * D_MODEL + lo + HEAD_DIM])

    # ---- attention: per head, all batches at once -----------------------
    dn = (((1,), (1,)), ((), ()))          # contract on head_dim; K transpose folded into the MXU op
    heads = []
    for h in range(NHEAD):                 # static unrolled, NHEAD=4
        # 1/sqrt(head_dim) already folded into the Q projection weights/bias.
        s = jax.lax.dot_general(qs[h], ks[h], dn,
                                preferred_element_type=jnp.float32)    # (S*B, S*B)
        s = jnp.where(same_batch, s, -1e30)                            # isolate batches
        s = s - jnp.max(s, axis=-1, keepdims=True)
        p = jnp.exp(s)
        p = p * pl.reciprocal(jnp.sum(p, axis=-1, keepdims=True), approx=True)
        heads.append(jnp.dot(p.astype(jnp.bfloat16), vs[h],
                             preferred_element_type=jnp.float32))      # (S*B, hd)

    # single out-projection: heads concatenated along lanes, one MXU pass
    o_heads = jnp.concatenate(heads, axis=1).astype(jnp.bfloat16)      # (S*B, E)
    attn = jnp.dot(o_heads, wo_ref[...],
                   preferred_element_type=jnp.float32) + bo

    # residual 1 (dropout1 identity at inference)
    y = x + alpha * attn

    # ---- feed-forward block (relu activation, dropout identity) -------------
    h1 = jnp.maximum(
        jnp.dot(y.astype(jnp.bfloat16), w1_ref[...],
                preferred_element_type=jnp.float32) + b1, 0.0)
    ff = jnp.dot(h1.astype(jnp.bfloat16), w2_ref[...],
                 preferred_element_type=jnp.float32) + b2

    # residual 2 (dropout2 identity)
    o_ref[...] = (y + alpha * ff).astype(o_ref.dtype)
    # TODO(synk): training-mode dropout would need pltpu.prng_* masking; only
    # eval-mode (identity) semantics are implemented here.
    # TODO(synk): when B/S grow, give batch its own "parallel" grid axis
    # (uses v7x's 2nd TensorCore and drops the cross-batch mask work) and block
    # the (rows, rows) score matrix with an online-softmax accumulator before
    # it approaches the VMEM budget (64 MiB physical on v7x vs 128 MiB v5e/v6e);
    # also keep the stored output last dim a multiple of 128 at that point.


def transformer_encoder_layer(src, params):
    """src: (S, B, E) float32 (PyTorch batch_first=False layout). Returns same shape."""
    S, B, E = src.shape
    # Row-major flatten (free, no data movement): row r = (s, b) with r = s*B + b.
    x = src.reshape(S * B, E)

    vmem = pl.BlockSpec(memory_space=pltpu.MemorySpace.VMEM)
    smem = pl.BlockSpec(memory_space=pltpu.MemorySpace.SMEM)

    out = pl.pallas_call(
        encoder_layer_kernel,
        out_shape=jax.ShapeDtypeStruct((S * B, E), src.dtype),
        in_specs=[vmem, vmem, vmem, vmem, vmem, vmem, vmem, smem],
        out_specs=vmem,
    )(x, params["wqkv"], params["bqkv"], params["wo"], params["bias"],
      params["w1"], params["w2"], params["alpha"])

    return out.reshape(S, B, E)           # free reshape back to (S, B, E)


def make_params(key):
    """Deterministic synthetic parameters matching the module's shapes.
    PyTorch stores Linear weights as (out, in); we pre-transpose to (in, out),
    pre-fuse Q/K/V, fold the softmax scale into Q, and store matmul weights in
    bf16 (MXU-native; f32 accumulation in-kernel). Also returns unfused f32
    params for the pure-JAX reference."""
    ks = jax.random.split(key, 8)
    scale = 0.1
    in_proj_w = scale * jax.random.normal(ks[0], (3 * D_MODEL, D_MODEL), jnp.float32)
    in_proj_b = scale * jax.random.normal(ks[1], (3 * D_MODEL,), jnp.float32)
    out_proj_w = scale * jax.random.normal(ks[2], (D_MODEL, D_MODEL), jnp.float32)
    out_proj_b = scale * jax.random.normal(ks[3], (D_MODEL,), jnp.float32)
    w1 = scale * jax.random.normal(ks[4], (DIM_FF, D_MODEL), jnp.float32)
    b1 = scale * jax.random.normal(ks[5], (DIM_FF,), jnp.float32)
    w2 = scale * jax.random.normal(ks[6], (D_MODEL, DIM_FF), jnp.float32)
    b2 = scale * jax.random.normal(ks[7], (D_MODEL,), jnp.float32)
    # __init__ sets alpha = zeros(1); use a nonzero deterministic value so the
    # attention/FFN path is actually exercised (alpha=0 -> output == input).
    alpha = jnp.array([0.5], jnp.float32)

    wq = in_proj_w[:D_MODEL].T
    wk = in_proj_w[D_MODEL:2 * D_MODEL].T
    wv = in_proj_w[2 * D_MODEL:].T
    bq = in_proj_b[:D_MODEL]
    bk = in_proj_b[D_MODEL:2 * D_MODEL]
    bv = in_proj_b[2 * D_MODEL:]

    sm_scale = 1.0 / math.sqrt(HEAD_DIM)
    kernel_params = {
        # fused QKV projection with 1/sqrt(head_dim) folded into the Q part
        "wqkv": jnp.concatenate([wq * sm_scale, wk, wv], axis=1).astype(jnp.bfloat16),
        "bqkv": jnp.concatenate([bq * sm_scale, bk, bv]).reshape(1, 3 * D_MODEL),
        "wo": out_proj_w.T.astype(jnp.bfloat16),                         # (E, E)
        "bias": jnp.concatenate([out_proj_b, b1, b2]).reshape(1, -1),    # (1, 128) f32
        "w1": w1.T.astype(jnp.bfloat16),                                 # (E, FF)
        "w2": w2.T.astype(jnp.bfloat16),                                 # (FF, E)
        "alpha": alpha,                                                  # (1,) -> SMEM
    }
    ref_params = {
        "wq": wq, "wk": wk, "wv": wv, "bq": bq, "bk": bk, "bv": bv,
        "wo": out_proj_w.T, "bo": out_proj_b,
        "w1": w1.T, "b1": b1, "w2": w2.T, "b2": b2, "alpha": alpha[0],
    }
    return kernel_params, ref_params


def reference_layer(src, p):
    """Pure-JAX f32 reference matching PyTorch semantics (eval mode, no masks)."""
    x = jnp.transpose(src, (1, 0, 2))                # (B, S, E)
    B, S, E = x.shape
    q = x @ p["wq"] + p["bq"]
    k = x @ p["wk"] + p["bk"]
    v = x @ p["wv"] + p["bv"]

    def split(t):
        return t.reshape(B, S, NHEAD, HEAD_DIM).transpose(0, 2, 1, 3)

    qh, kh, vh = split(q), split(k), split(v)
    s = jnp.einsum("bhqd,bhkd->bhqk", qh, kh) / jnp.sqrt(jnp.float32(HEAD_DIM))
    a = jax.nn.softmax(s, axis=-1)
    o = jnp.einsum("bhqk,bhkd->bhqd", a, vh).transpose(0, 2, 1, 3).reshape(B, S, E)
    o = o @ p["wo"] + p["bo"]
    y = x + p["alpha"] * o
    ff = jnp.maximum(y @ p["w1"] + p["b1"], 0.0) @ p["w2"] + p["b2"]
    out = y + p["alpha"] * ff
    return jnp.transpose(out, (1, 0, 2))


if __name__ == "__main__":
    key = jax.random.PRNGKey(0)
    k_src, k_par = jax.random.split(key)
    src = jax.random.normal(k_src, (SEQ, BATCH, D_MODEL), jnp.float32)  # (S, B, E)
    kernel_params, ref_params = make_params(k_par)

    out = jax.block_until_ready(transformer_encoder_layer(src, kernel_params))
    ref = jax.block_until_ready(reference_layer(src, ref_params))

    assert out.shape == src.shape, (out.shape, src.shape)
    max_err = float(jnp.max(jnp.abs(out - ref)))
    # bf16 MXU operands (f32 accumulate) + approx reciprocal vs. a pure-f32
    # reference -> tolerance loosened accordingly; outputs are O(1), so this
    # still catches any structural error (mask/scale/bias/residual).
    assert jnp.allclose(out, ref, atol=2e-2, rtol=2e-2), max_err
    print("KERNEL_OK")
</pallas_src>

<mosaic_0001>
module attributes {stable_mosaic.version = 11 : i64} {
  func.func @encoder_layer_kernel(%arg0: memref<16x32xf32, #tpu.memory_space<vmem>>, %arg1: memref<32x96xbf16, #tpu.memory_space<vmem>>, %arg2: memref<1x96xf32, #tpu.memory_space<vmem>>, %arg3: memref<32x32xbf16, #tpu.memory_space<vmem>>, %arg4: memref<1x128xf32, #tpu.memory_space<vmem>>, %arg5: memref<32x64xbf16, #tpu.memory_space<vmem>>, %arg6: memref<64x32xbf16, #tpu.memory_space<vmem>>, %arg7: memref<1xf32, #tpu.memory_space<smem>>, %arg8: memref<16x32xf32, #tpu.memory_space<vmem>>) attributes {dimension_semantics = [], scalar_prefetch = 0 : i64, scratch_operands = 0 : i64, tpu.core_type = #tpu.core_type<tc>} {
    %c0 = arith.constant 0 : index
    %c0_0 = arith.constant 0 : index
    %0 = vector.load %arg0[%c0, %c0_0] : memref<16x32xf32, #tpu.memory_space<vmem>>, vector<16x32xf32>
    %1 = arith.truncf %0 : vector<16x32xf32> to vector<16x32xbf16>
    %c0_1 = arith.constant 0 : index
    %2 = memref.load %arg7[%c0_1] : memref<1xf32, #tpu.memory_space<smem>>
    %c0_2 = arith.constant 0 : index
    %c0_3 = arith.constant 0 : index
    %3 = vector.load %arg1[%c0_2, %c0_3] : memref<32x96xbf16, #tpu.memory_space<vmem>>, vector<32x96xbf16>
    %cst = arith.constant dense<0.000000e+00> : vector<16x96xf32>
    %4 = tpu.matmul %1, %3, %cst {dimension_numbers = #tpu.dot_dimension_numbers<[1], [0], [0], [1], [0, 0, 1, 1], [], []>} : vector<16x32xbf16>, vector<32x96xbf16>, vector<16x96xf32> -> vector<16x96xf32>
    %c0_4 = arith.constant 0 : index
    %c0_5 = arith.constant 0 : index
    %5 = vector.load %arg2[%c0_4, %c0_5] : memref<1x96xf32, #tpu.memory_space<vmem>>, vector<1x96xf32>
    %6 = vector.broadcast %5 : vector<1x96xf32> to vector<16x96xf32>
    %7 = arith.addf %4, %6 : vector<16x96xf32>
    %8 = arith.truncf %7 : vector<16x96xf32> to vector<16x96xbf16>
    %c0_6 = arith.constant 0 : index
    %c0_7 = arith.constant 0 : index
    %9 = vector.load %arg4[%c0_6, %c0_7] : memref<1x128xf32, #tpu.memory_space<vmem>>, vector<1x128xf32>
    %10 = vector.extract_strided_slice %9 {offsets = [0, 0], sizes = [1, 32], strides = [1, 1]} : vector<1x128xf32> to vector<1x32xf32>
    %11 = vector.extract_strided_slice %9 {offsets = [0, 32], sizes = [1, 64], strides = [1, 1]} : vector<1x128xf32> to vector<1x64xf32>
    %12 = vector.extract_strided_slice %9 {offsets = [0, 96], sizes = [1, 32], strides = [1, 1]} : vector<1x128xf32> to vector<1x32xf32>
    %13 = tpu.iota {dimensions = array<i32: 0>} : vector<16x16xi32>
    %c2_i32 = arith.constant 2 : i32
    %c0_i32 = arith.constant 0 : i32
    %14 = arith.cmpi eq, %c2_i32, %c0_i32 : i32
    %c1_i32 = arith.constant 1 : i32
    %15 = arith.select %14, %c1_i32, %c2_i32 : i32
    %16 = vector.broadcast %15 : i32 to vector<16x16xi32>
    %17 = arith.remsi %13, %16 : vector<16x16xi32>
    %c0_i32_8 = arith.constant 0 : i32
    %18 = vector.broadcast %c0_i32_8 : i32 to vector<16x16xi32>
    %19 = arith.cmpi ne, %17, %18 : vector<16x16xi32>
    %c0_i32_9 = arith.constant 0 : i32
    %20 = vector.broadcast %c0_i32_9 : i32 to vector<16x16xi32>
    %21 = arith.cmpi slt, %17, %20 : vector<16x16xi32>
    %c0_i32_10 = arith.constant 0 : i32
    %22 = arith.cmpi slt, %15, %c0_i32_10 : i32
    %23 = vector.broadcast %22 : i1 to vector<16x16xi1>
    %24 = vector.broadcast %23 : vector<16x16xi1> to vector<16x16xi1>
    %25 = arith.xori %21, %24 : vector<16x16xi1>
    %26 = arith.andi %25, %19 : vector<16x16xi1>
    %27 = vector.broadcast %15 : i32 to vector<16x16xi32>
    %28 = arith.addi %17, %27 : vector<16x16xi32>
    %29 = arith.select %26, %28, %17 : vector<16x16xi1>, vector<16x16xi32>
    %30 = tpu.iota {dimensions = array<i32: 1>} : vector<16x16xi32>
    %c2_i32_11 = arith.constant 2 : i32
    %c0_i32_12 = arith.constant 0 : i32
    %31 = arith.cmpi eq, %c2_i32_11, %c0_i32_12 : i32
    %c1_i32_13 = arith.constant 1 : i32
    %32 = arith.select %31, %c1_i32_13, %c2_i32_11 : i32
    %33 = vector.broadcast %32 : i32 to vector<16x16xi32>
    %34 = arith.remsi %30, %33 : vector<16x16xi32>
    %c0_i32_14 = arith.constant 0 : i32
    %35 = vector.broadcast %c0_i32_14 : i32 to vector<16x16xi32>
    %36 = arith.cmpi ne, %34, %35 : vector<16x16xi32>
    %c0_i32_15 = arith.constant 0 : i32
    %37 = vector.broadcast %c0_i32_15 : i32 to vector<16x16xi32>
    %38 = arith.cmpi slt, %34, %37 : vector<16x16xi32>
    %c0_i32_16 = arith.constant 0 : i32
    %39 = arith.cmpi slt, %32, %c0_i32_16 : i32
    %40 = vector.broadcast %39 : i1 to vector<16x16xi1>
    %41 = vector.broadcast %40 : vector<16x16xi1> to vector<16x16xi1>
    %42 = arith.xori %38, %41 : vector<16x16xi1>
    %43 = arith.andi %42, %36 : vector<16x16xi1>
    %44 = vector.broadcast %32 : i32 to vector<16x16xi32>
    %45 = arith.addi %34, %44 : vector<16x16xi32>
    %46 = arith.select %43, %45, %34 : vector<16x16xi1>, vector<16x16xi32>
    %47 = arith.cmpi eq, %29, %46 : vector<16x16xi32>
    %48 = vector.extract_strided_slice %8 {offsets = [0, 0], sizes = [16, 8], strides = [1, 1]} : vector<16x96xbf16> to vector<16x8xbf16>
    %49 = vector.extract_strided_slice %8 {offsets = [0, 32], sizes = [16, 8], strides = [1, 1]} : vector<16x96xbf16> to vector<16x8xbf16>
    %50 = vector.extract_strided_slice %8 {offsets = [0, 64], sizes = [16, 8], strides = [1, 1]} : vector<16x96xbf16> to vector<16x8xbf16>
    %51 = vector.extract_strided_slice %8 {offsets = [0, 8], sizes = [16, 8], strides = [1, 1]} : vector<16x96xbf16> to vector<16x8xbf16>
    %52 = vector.extract_strided_slice %8 {offsets = [0, 40], sizes = [16, 8], strides = [1, 1]} : vector<16x96xbf16> to vector<16x8xbf16>
    %53 = vector.extract_strided_slice %8 {offsets = [0, 72], sizes = [16, 8], strides = [1, 1]} : vector<16x96xbf16> to vector<16x8xbf16>
    %54 = vector.extract_strided_slice %8 {offsets = [0, 16], sizes = [16, 8], strides = [1, 1]} : vector<16x96xbf16> to vector<16x8xbf16>
    %55 = vector.extract_strided_slice %8 {offsets = [0, 48], sizes = [16, 8], strides = [1, 1]} : vector<16x96xbf16> to vector<16x8xbf16>
    %56 = vector.extract_strided_slice %8 {offsets = [0, 80], sizes = [16, 8], strides = [1, 1]} : vector<16x96xbf16> to vector<16x8xbf16>
    %57 = vector.extract_strided_slice %8 {offsets = [0, 24], sizes = [16, 8], strides = [1, 1]} : vector<16x96xbf16> to vector<16x8xbf16>
    %58 = vector.extract_strided_slice %8 {offsets = [0, 56], sizes = [16, 8], strides = [1, 1]} : vector<16x96xbf16> to vector<16x8xbf16>
    %59 = vector.extract_strided_slice %8 {offsets = [0, 88], sizes = [16, 8], strides = [1, 1]} : vector<16x96xbf16> to vector<16x8xbf16>
    %cst_17 = arith.constant dense<0.000000e+00> : vector<16x16xf32>
    %60 = tpu.matmul %48, %49, %cst_17 {dimension_numbers = #tpu.dot_dimension_numbers<[1], [1], [0], [0], [0, 0, 1, 0], [], []>} : vector<16x8xbf16>, vector<16x8xbf16>, vector<16x16xf32> -> vector<16x16xf32>
    %cst_18 = arith.constant -1.000000e+30 : f32
    %61 = vector.broadcast %cst_18 : f32 to vector<16x16xf32>
    %62 = arith.select %47, %60, %61 : vector<16x16xi1>, vector<16x16xf32>
    %cst_19 = arith.constant dense<0xFF800000> : vector<16xf32>
    %63 = vector.multi_reduction <maximumf>, %62, %cst_19 [1] : vector<16x16xf32> to vector<16xf32>
    %64 = vector.shape_cast %63 : vector<16xf32> to vector<16x1xf32>
    %65 = vector.broadcast %64 : vector<16x1xf32> to vector<16x16xf32>
    %66 = arith.subf %62, %65 : vector<16x16xf32>
    %67 = math.exp %66 : vector<16x16xf32>
    %cst_20 = arith.constant dense<0.000000e+00> : vector<16xf32>
    %68 = vector.multi_reduction <add>, %67, %cst_20 [1] : vector<16x16xf32> to vector<16xf32>
    %69 = vector.shape_cast %68 : vector<16xf32> to vector<16x1xf32>
    %70 = tpu.reciprocal %69 {approx = true} : vector<16x1xf32> -> vector<16x1xf32>
    %71 = vector.broadcast %70 : vector<16x1xf32> to vector<16x16xf32>
    %72 = arith.mulf %67, %71 : vector<16x16xf32>
    %73 = arith.truncf %72 : vector<16x16xf32> to vector<16x16xbf16>
    %cst_21 = arith.constant dense<0.000000e+00> : vector<16x8xf32>
    %74 = tpu.matmul %73, %50, %cst_21 {dimension_numbers = #tpu.dot_dimension_numbers<[1], [0], [0], [1], [0, 0, 1, 1], [], []>} : vector<16x16xbf16>, vector<16x8xbf16>, vector<16x8xf32> -> vector<16x8xf32>
    %cst_22 = arith.constant dense<0.000000e+00> : vector<16x16xf32>
    %75 = tpu.matmul %51, %52, %cst_22 {dimension_numbers = #tpu.dot_dimension_numbers<[1], [1], [0], [0], [0, 0, 1, 0], [], []>} : vector<16x8xbf16>, vector<16x8xbf16>, vector<16x16xf32> -> vector<16x16xf32>
    %cst_23 = arith.constant -1.000000e+30 : f32
    %76 = vector.broadcast %cst_23 : f32 to vector<16x16xf32>
    %77 = arith.select %47, %75, %76 : vector<16x16xi1>, vector<16x16xf32>
    %cst_24 = arith.constant dense<0xFF800000> : vector<16xf32>
    %78 = vector.multi_reduction <maximumf>, %77, %cst_24 [1] : vector<16x16xf32> to vector<16xf32>
    %79 = vector.shape_cast %78 : vector<16xf32> to vector<16x1xf32>
    %80 = vector.broadcast %79 : vector<16x1xf32> to vector<16x16xf32>
    %81 = arith.subf %77, %80 : vector<16x16xf32>
    %82 = math.exp %81 : vector<16x16xf32>
    %cst_25 = arith.constant dense<0.000000e+00> : vector<16xf32>
    %83 = vector.multi_reduction <add>, %82, %cst_25 [1] : vector<16x16xf32> to vector<16xf32>
    %84 = vector.shape_cast %83 : vector<16xf32> to vector<16x1xf32>
    %85 = tpu.reciprocal %84 {approx = true} : vector<16x1xf32> -> vector<16x1xf32>
    %86 = vector.broadcast %85 : vector<16x1xf32> to vector<16x16xf32>
    %87 = arith.mulf %82, %86 : vector<16x16xf32>
    %88 = arith.truncf %87 : vector<16x16xf32> to vector<16x16xbf16>
    %cst_26 = arith.constant dense<0.000000e+00> : vector<16x8xf32>
    %89 = tpu.matmul %88, %53, %cst_26 {dimension_numbers = #tpu.dot_dimension_numbers<[1], [0], [0], [1], [0, 0, 1, 1], [], []>} : vector<16x16xbf16>, vector<16x8xbf16>, vector<16x8xf32> -> vector<16x8xf32>
    %cst_27 = arith.constant dense<0.000000e+00> : vector<16x16xf32>
    %90 = tpu.matmul %54, %55, %cst_27 {dimension_numbers = #tpu.dot_dimension_numbers<[1], [1], [0], [0], [0, 0, 1, 0], [], []>} : vector<16x8xbf16>, vector<16x8xbf16>, vector<16x16xf32> -> vector<16x16xf32>
    %cst_28 = arith.constant -1.000000e+30 : f32
    %91 = vector.broadcast %cst_28 : f32 to vector<16x16xf32>
    %92 = arith.select %47, %90, %91 : vector<16x16xi1>, vector<16x16xf32>
    %cst_29 = arith.constant dense<0xFF800000> : vector<16xf32>
    %93 = vector.multi_reduction <maximumf>, %92, %cst_29 [1] : vector<16x16xf32> to vector<16xf32>
    %94 = vector.shape_cast %93 : vector<16xf32> to vector<16x1xf32>
    %95 = vector.broadcast %94 : vector<16x1xf32> to vector<16x16xf32>
    %96 = arith.subf %92, %95 : vector<16x16xf32>
    %97 = math.exp %96 : vector<16x16xf32>
    %cst_30 = arith.constant dense<0.000000e+00> : vector<16xf32>
    %98 = vector.multi_reduction <add>, %97, %cst_30 [1] : vector<16x16xf32> to vector<16xf32>
    %99 = vector.shape_cast %98 : vector<16xf32> to vector<16x1xf32>
    %100 = tpu.reciprocal %99 {approx = true} : vector<16x1xf32> -> vector<16x1xf32>
    %101 = vector.broadcast %100 : vector<16x1xf32> to vector<16x16xf32>
    %102 = arith.mulf %97, %101 : vector<16x16xf32>
    %103 = arith.truncf %102 : vector<16x16xf32> to vector<16x16xbf16>
    %cst_31 = arith.constant dense<0.000000e+00> : vector<16x8xf32>
    %104 = tpu.matmul %103, %56, %cst_31 {dimension_numbers = #tpu.dot_dimension_numbers<[1], [0], [0], [1], [0, 0, 1, 1], [], []>} : vector<16x16xbf16>, vector<16x8xbf16>, vector<16x8xf32> -> vector<16x8xf32>
    %cst_32 = arith.constant dense<0.000000e+00> : vector<16x16xf32>
    %105 = tpu.matmul %57, %58, %cst_32 {dimension_numbers = #tpu.dot_dimension_numbers<[1], [1], [0], [0], [0, 0, 1, 0], [], []>} : vector<16x8xbf16>, vector<16x8xbf16>, vector<16x16xf32> -> vector<16x16xf32>
    %cst_33 = arith.constant -1.000000e+30 : f32
    %106 = vector.broadcast %cst_33 : f32 to vector<16x16xf32>
    %107 = arith.select %47, %105, %106 : vector<16x16xi1>, vector<16x16xf32>
    %cst_34 = arith.constant dense<0xFF800000> : vector<16xf32>
    %108 = vector.multi_reduction <maximumf>, %107, %cst_34 [1] : vector<16x16xf32> to vector<16xf32>
    %109 = vector.shape_cast %108 : vector<16xf32> to vector<16x1xf32>
    %110 = vector.broadcast %109 : vector<16x1xf32> to vector<16x16xf32>
    %111 = arith.subf %107, %110 : vector<16x16xf32>
    %112 = math.exp %111 : vector<16x16xf32>
    %cst_35 = arith.constant dense<0.000000e+00> : vector<16xf32>
    %113 = vector.multi_reduction <add>, %112, %cst_35 [1] : vector<16x16xf32> to vector<16xf32>
    %114 = vector.shape_cast %113 : vector<16xf32> to vector<16x1xf32>
    %115 = tpu.reciprocal %114 {approx = true} : vector<16x1xf32> -> vector<16x1xf32>
    %116 = vector.broadcast %115 : vector<16x1xf32> to vector<16x16xf32>
    %117 = arith.mulf %112, %116 : vector<16x16xf32>
    %118 = arith.truncf %117 : vector<16x16xf32> to vector<16x16xbf16>
    %cst_36 = arith.constant dense<0.000000e+00> : vector<16x8xf32>
    %119 = tpu.matmul %118, %59, %cst_36 {dimension_numbers = #tpu.dot_dimension_numbers<[1], [0], [0], [1], [0, 0, 1, 1], [], []>} : vector<16x16xbf16>, vector<16x8xbf16>, vector<16x8xf32> -> vector<16x8xf32>
    %120 = tpu.concatenate %74, %89, %104, %119 in 1 : vector<16x8xf32>, vector<16x8xf32>, vector<16x8xf32>, vector<16x8xf32> -> vector<16x32xf32>
    %121 = arith.truncf %120 : vector<16x32xf32> to vector<16x32xbf16>
    %c0_37 = arith.constant 0 : index
    %c0_38 = arith.constant 0 : index
    %122 = vector.load %arg3[%c0_37, %c0_38] : memref<32x32xbf16, #tpu.memory_space<vmem>>, vector<32x32xbf16>
    %cst_39 = arith.constant dense<0.000000e+00> : vector<16x32xf32>
    %123 = tpu.matmul %121, %122, %cst_39 {dimension_numbers = #tpu.dot_dimension_numbers<[1], [0], [0], [1], [0, 0, 1, 1], [], []>} : vector<16x32xbf16>, vector<32x32xbf16>, vector<16x32xf32> -> vector<16x32xf32>
    %124 = vector.broadcast %10 : vector<1x32xf32> to vector<16x32xf32>
    %125 = arith.addf %123, %124 : vector<16x32xf32>
    %126 = vector.broadcast %2 : f32 to vector<16x32xf32>
    %127 = arith.mulf %126, %125 : vector<16x32xf32>
    %128 = arith.addf %0, %127 : vector<16x32xf32>
    %129 = arith.truncf %128 : vector<16x32xf32> to vector<16x32xbf16>
    %c0_40 = arith.constant 0 : index
    %c0_41 = arith.constant 0 : index
    %130 = vector.load %arg5[%c0_40, %c0_41] : memref<32x64xbf16, #tpu.memory_space<vmem>>, vector<32x64xbf16>
    %cst_42 = arith.constant dense<0.000000e+00> : vector<16x64xf32>
    %131 = tpu.matmul %129, %130, %cst_42 {dimension_numbers = #tpu.dot_dimension_numbers<[1], [0], [0], [1], [0, 0, 1, 1], [], []>} : vector<16x32xbf16>, vector<32x64xbf16>, vector<16x64xf32> -> vector<16x64xf32>
    %132 = vector.broadcast %11 : vector<1x64xf32> to vector<16x64xf32>
    %133 = arith.addf %131, %132 : vector<16x64xf32>
    %cst_43 = arith.constant 0.000000e+00 : f32
    %134 = vector.broadcast %cst_43 : f32 to vector<16x64xf32>
    %135 = arith.maximumf %133, %134 : vector<16x64xf32>
    %136 = arith.truncf %135 : vector<16x64xf32> to vector<16x64xbf16>
    %c0_44 = arith.constant 0 : index
    %c0_45 = arith.constant 0 : index
    %137 = vector.load %arg6[%c0_44, %c0_45] : memref<64x32xbf16, #tpu.memory_space<vmem>>, vector<64x32xbf16>
    %cst_46 = arith.constant dense<0.000000e+00> : vector<16x32xf32>
    %138 = tpu.matmul %136, %137, %cst_46 {dimension_numbers = #tpu.dot_dimension_numbers<[1], [0], [0], [1], [0, 0, 1, 1], [], []>} : vector<16x64xbf16>, vector<64x32xbf16>, vector<16x32xf32> -> vector<16x32xf32>
    %139 = vector.broadcast %12 : vector<1x32xf32> to vector<16x32xf32>
    %140 = arith.addf %138, %139 : vector<16x32xf32>
    %141 = vector.broadcast %2 : f32 to vector<16x32xf32>
    %142 = arith.mulf %141, %140 : vector<16x32xf32>
    %143 = arith.addf %128, %142 : vector<16x32xf32>
    %c0_47 = arith.constant 0 : index
    %c0_48 = arith.constant 0 : index
    %144 = vector.load %arg8[%c0_47, %c0_48] : memref<16x32xf32, #tpu.memory_space<vmem>>, vector<16x32xf32>
    tpu.vector_store %arg8[%c0_47, %c0_48], %143 {strides = array<i32>} : memref<16x32xf32, #tpu.memory_space<vmem>>, vector<16x32xf32>,
    return
  }
}

</mosaic_0001>

<llo_original>
// kernel: tpu_custom_call.1
$region0: #{tpu_custom_call.1}
  #allocation0 [shape = 'u32[]', space=smem, size = 0x4, offset = 0x4, fixed_abs, tag = 'smem constant byte address 0x4 - core index']
  #allocation1 [shape = 'u32[72,128]{1,0:T(1,128)}', space=vmem, size = 0x9000, scoped, tag = 'internal scratch']
  #allocation2 [shape = 'f32[1]{0:T(128)S(6)}', space=smem, size = 0x200, scoped, tag = 'scoped memory for tpu_custom_call.1']
  %s0 = inlined_call_operand.vmem [shape: f32[16,32], index: 0, kind: input, shape index: {}]
  %s1 = inlined_call_operand.vmem [shape: bf16[32,96], index: 1, kind: input, shape index: {}]
  %s2 = inlined_call_operand.vmem [shape: f32[1,96], index: 2, kind: input, shape index: {}]
  %s3 = inlined_call_operand.vmem [shape: bf16[32,32], index: 3, kind: input, shape index: {}]
  %s4 = inlined_call_operand.vmem [shape: f32[1,128], index: 4, kind: input, shape index: {}]
  %s5 = inlined_call_operand.hbm [shape: bf16[32,64], index: 5, kind: input, shape index: {}]
  %s6 = inlined_call_operand.vmem [shape: bf16[64,32], index: 6, kind: input, shape index: {}]
  %s7 = inlined_call_operand.<no memory space> [shape: f32[1], index: 7, kind: input, shape index: {}]
  %s8 = inlined_call_operand.hbm [shape: f32[16,32], index: 8, kind: output, shape index: {}]
  %s9 = sld [smem:[#allocation0]]
  $region46: #{tpu_custom_call.1} parent=0
    _
  %s11 = ssub.s32 1, %s9
  %s12 = scalar_select 0, %s11, %s9
  %13 = sst [smem:[#allocation2]] %s7
  $region1: #{tpu_custom_call.1} parent=0
    #allocation3 [shape = 'u8[8192]{0}', space=vmem, size = 0x2000, scoped, tag = 'input window, operand 5, single buffered']
    #allocation4 [shape = 's32[1]{0}', space=sflag, size = 0x4, scoped, tag = 'scoped memory for tpu_custom_call.1']
    #allocation5 [shape = 's32[1]{0}', space=sflag, size = 0x4, scoped, tag = 'scoped memory for tpu_custom_call.1']
    #allocation6 [shape = 'u8[8192]{0}', space=vmem, size = 0x2000, scoped, tag = 'output window, operand 0, single buffered']
    %14 = vsyncpa [#allocation4], 0
    %15 = vsyncpa [#allocation5], 0
    // Predicated region
    $region2: #{tpu_custom_call.1} parent=1 // pred_check
      _
    $region3: #{tpu_custom_call.1} parent=1 // pred_check_branch
      %17 = sbr.rel (0) target = $region5
    $region4: #{tpu_custom_call.1} parent=1 // pred_region
      _
    $region5: #{tpu_custom_call.1} parent=1 // pred_fallthru
      _
    // Predicated region
    $region6: #{tpu_custom_call.1} parent=1 // pred_check
      _
    $region7: #{tpu_custom_call.1} parent=1 // pred_check_branch
      %19 = sbr.rel (0) target = $region9
    $region8: #{tpu_custom_call.1} parent=1 // pred_region
      _
    $region9: #{tpu_custom_call.1} parent=1 // pred_fallthru
      _
    // Predicated region
    $region10: #{tpu_custom_call.1} parent=1 // pred_check
      _
    $region11: #{tpu_custom_call.1} parent=1 // pred_check_branch
      %21 = sbr.rel (0) target = $region13
    $region12: #{tpu_custom_call.1} parent=1 // pred_region
      _
    $region13: #{tpu_custom_call.1} parent=1 // pred_fallthru
      _
    // Predicated region
    $region14: #{tpu_custom_call.1} parent=1 // pred_check
      _
    $region15: #{tpu_custom_call.1} parent=1 // pred_check_branch
      %23 = sbr.rel (0) target = $region17
    $region16: #{tpu_custom_call.1} parent=1 // pred_region
      _
    $region17: #{tpu_custom_call.1} parent=1 // pred_fallthru
      _
    // Predicated region
    $region18: #{tpu_custom_call.1} parent=1 // pred_check
      _
    $region19: #{tpu_custom_call.1} parent=1 // pred_check_branch
      %25 = sbr.rel (0) target = $region21
    $region20: #{tpu_custom_call.1} parent=1 // pred_region
      _
    $region21: #{tpu_custom_call.1} parent=1 // pred_fallthru
      _
    // Predicated region
    $region22: #{tpu_custom_call.1} parent=1 // pred_check
      _
    $region23: #{tpu_custom_call.1} parent=1 // pred_check_branch
      %27 = sbr.rel (0) target = $region25
    $region24: #{tpu_custom_call.1} parent=1 // pred_region
      %29 = vsyncadd [#allocation4], 0
      %s30 = sshll.u32 %s5, 4
      %s31 = int_to_ptr.hbm [resolvable:$true] %s30
      %s32 = sshll.u32 [#allocation3], 4
      %s33 = int_to_ptr.vmem [resolvable:$true] %s32
      %38 = dma.hbm_to_vmem [thread:$0]  %s31, 256, %s33, [#allocation4], 64, 64, 4
    $region25: #{tpu_custom_call.1} parent=1 // pred_fallthru
      _
    // Predicated region
    $region26: #{tpu_custom_call.1} parent=1 // pred_check
      _
    $region27: #{tpu_custom_call.1} parent=1 // pred_check_branch
      %40 = sbr.rel (0) target = $region29
    $region28: #{tpu_custom_call.1} parent=1 // pred_region
      _
    $region29: #{tpu_custom_call.1} parent=1 // pred_fallthru
      _
    // Predicated region
    $region30: #{tpu_custom_call.1} parent=1 // pred_check
      _
    $region31: #{tpu_custom_call.1} parent=1 // pred_check_branch
      %42 = sbr.rel (0) target = $region33
    $region32: #{tpu_custom_call.1} parent=1 // pred_region
      _
    $region33: #{tpu_custom_call.1} parent=1 // pred_fallthru
      _
    // Predicated region
    $region34: #{tpu_custom_call.1} parent=1 // pred_check
      _
    $region35: #{tpu_custom_call.1} parent=1 // pred_check_branch
      %44 = sbr.rel (0) target = $region37
    $region36: #{tpu_custom_call.1} parent=1 // pred_region
      %46 = dma.done [#allocation4], 256
    $region37: #{tpu_custom_call.1} parent=1 // pred_fallthru
      _
    %v48 = vld [vmem:[%s0] sm:$0xff]
    %v49 = vld [vmem:[%s0 + $0x8] sm:$0xff]
    %v50 = vpack.c.bf16 %v49, %v48
    %s51 = sld [smem:[#allocation2]]
    %v52 = vld [vmem:[%s1] sm:$0xf]
    %v53 = vld [vmem:[%s1 + $0x4] sm:$0xf]
    %v54 = vld [vmem:[%s1 + $0x8] sm:$0xf]
    %v55 = vld [vmem:[%s1 + $0xc] sm:$0xf]
    %v56 = vld [vmem:[%s2] sm:$0x1]
    %v58 = vperm.slane %v56, 0
    %v64 = vunpack.c.l.b16 %v52
    %v65 = vunpack.c.l.b16 %v53
    %v66 = vunpack.c.l.b16 %v54
    %v67 = vunpack.c.l.b16 %v55
    %v68 = vpack.c.b16 %v65, %v64
    %v69 = vpack.c.b16 %v67, %v66
    %vm72 = vcmask 261120
    %v74 = vsel %vm72, %v50, 0
    %76 = vmatpush.bf16.msra.mxu0 0
    %77 = vmatpush.bf16.msra.mxu0 0
    %78 = vmatpush.bf16.msra.mxu0 0
    %79 = vmatpush.bf16.msra.mxu0 0
    %80 = vmatpush.bf16.msra.mxu0 0
    %81 = vmatpush.bf16.msra.mxu0 0
    %82 = vmatpush.bf16.msra.mxu0 %v69
    %83 = vmatpush.bf16.msra.mxu0 %v68
    %84 = vmatmul.bf16.gmra.mxu0 %v74
    %v85 = vpop.f32.mrf.mxu0
    %v86 = vadd.f32 %v58, %v85
    %v87 = vpop.f32.mrf.mxu0
    %v88 = vadd.f32 %v58, %v87
    %89 = vdwg.mxu0
    %v90 = vpack.c.bf16 %v86, %v86
    %v91 = vpack.c.bf16 %v88, %v88
    %v92 = vld [vmem:[%s4] sm:$0x1]
    %v93 = vlaneseq
    %v94 = vshrl.u32 %v93, 7
    %v95 = vadd.s32 %v94, 8
    %vm96 = vcmp.lt.s32.totalorder %v94, 0
    %v97 = vsub.s32 0, %v94
    %v98 = vsel %vm96, %v97, %v94
    %v99 = vshrl.u32 %v98, 1
    %v100 = vand.u32 %v98, 1
    %v101 = vsub.s32 0, %v100
    %v102 = vsel %vm96, %v101, %v100
    %vm103 = vcmp.lt.s32.totalorder %v95, 0
    %v104 = vsub.s32 0, %v95
    %v105 = vsel %vm103, %v104, %v95
    %v106 = vshrl.u32 %v105, 1
    %v107 = vand.u32 %v105, 1
    %v108 = vsub.s32 0, %v107
    %v109 = vsel %vm103, %v108, %v107
    %vm110 = vcmp.ne.s32.totalorder %v102, 0
    %vm111 = vcmp.ne.s32.totalorder %v109, 0
    %vm112 = vcmp.lt.s32.totalorder %v102, 0
    %vm113 = vcmp.lt.s32.totalorder %v109, 0
    %vm114 = vmand %vm112, %vm110
    %vm115 = vmand %vm113, %vm111
    %v116 = vadd.s32 %v102, 2
    %v117 = vadd.s32 %v109, 2
    %v118 = vsel %vm114, %v116, %v102
    %v119 = vsel %vm115, %v117, %v109
    %v120 = vlaneseq
    %v121 = vand.u32 %v120, 127
    %vm122 = vcmp.lt.s32.totalorder %v121, 0
    %v123 = vsub.s32 0, %v121
    %v124 = vsel %vm122, %v123, %v121
    %v125 = vshrl.u32 %v124, 1
    %v126 = vand.u32 %v124, 1
    %v127 = vsub.s32 0, %v126
    %v128 = vsel %vm122, %v127, %v126
    %vm129 = vcmp.ne.s32.totalorder %v128, 0
    %vm130 = vcmp.lt.s32.totalorder %v128, 0
    %vm131 = vmand %vm130, %vm129
    %v132 = vadd.s32 %v128, 2
    %v133 = vsel %vm131, %v132, %v128
    %vm134 = vcmp.eq.s32.totalorder %v118, %v133
    %vm135 = vcmp.eq.s32.totalorder %v119, %v133
    %v138 = vunpack.c.l.b16 %v90
    %v139 = vunpack.c.l.b16 %v91
    %v140 = vpack.c.b16 %v139, %v138
    %141 = vrot.lane.b32.xlu0 %v140, 96
    %v142 = vpop.permute.xlu0 %141
    %vm143 = vcmask 64512
    %v145 = vsel %vm143, %v140, 0
    %v148 = vsel %vm143, %v142, 0
    %150 = vmatpush.bf16.xpose.msra.mxu0 0
    %151 = vmatpush.bf16.xpose.msra.mxu0 0
    %152 = vmatpush.bf16.xpose.msra.mxu0 0
    %153 = vmatpush.bf16.xpose.msra.mxu0 0
    %154 = vmatpush.bf16.xpose.msra.mxu0 0
    %155 = vmatpush.bf16.xpose.msra.mxu0 0
    %156 = vmatpush.bf16.xpose.msra.mxu0 0
    %157 = vmatpush.bf16.xpose.msra.mxu0 %v148
    %158 = vmatmul.bf16.gmra.mxu0 %v145
    %v159 = vpop.f32.mrf.mxu0
    %v160 = vadd.f32 0.0, %v159
    %v161 = vpop.f32.mrf.mxu0
    %v162 = vadd.f32 0.0, %v161
    %163 = vdwg.mxu0
    %v164 = vsel %vm134, %v160, -1e+30
    %v165 = vsel %vm135, %v162, -1e+30
    %vm166 = vcmask 130048
    %v167 = vsel %vm166, %v164, -inf
    %168 = vmax.xlane.f32.xlu0 %v167
    %v169 = vpop.xlane.xlu0 %168
    %v170 = vsel %vm166, %v165, -inf
    %171 = vmax.xlane.f32.xlu0 %v170
    %v172 = vpop.xlane.xlu0 %171
    %v173 = vsub.f32 %v164, %v169
    %v174 = vsub.f32 %v165, %v172
    %v175 = vmul.f32 %v173, 1.442695
    %v176 = vpow.pop %v175
    %v177 = vmul.f32 %v174, 1.442695
    %v178 = vpow.pop %v177
    %v179 = vsel %vm166, %v176, 0.0
    %180 = vadd.xlane.f32.xlu0 %v179
    %v181 = vpop.xlane.xlu0 %180
    %v182 = vsel %vm166, %v178, 0.0
    %183 = vadd.xlane.f32.xlu0 %v182
    %v184 = vpop.xlane.xlu0 %183
    %v185 = vrcp.pop %v181
    %v186 = vrcp.pop %v184
    %v187 = vmul.f32 %v176, %v185
    %v188 = vmul.f32 %v178, %v186
    %v189 = vpack.c.bf16 %v188, %v187
    %190 = vrot.lane.b32.xlu0 %v140, 64
    %v191 = vpop.permute.xlu0 %190
    %v194 = vsel %vm166, %v189, 0
    %196 = vmatpush.bf16.msra.mxu0 0
    %197 = vmatpush.bf16.msra.mxu0 0
    %198 = vmatpush.bf16.msra.mxu0 0
    %199 = vmatpush.bf16.msra.mxu0 0
    %200 = vmatpush.bf16.msra.mxu0 0
    %201 = vmatpush.bf16.msra.mxu0 0
    %202 = vmatpush.bf16.msra.mxu0 0
    %203 = vmatpush.bf16.msra.mxu0 %v191
    %204 = vmatmul.bf16.gmra.mxu0 %v194
    %v205 = vpop.f32.mrf.mxu0
    %v206 = vadd.f32 0.0, %v205
    %v207 = vpop.f32.mrf.mxu0
    %v208 = vadd.f32 0.0, %v207
    %209 = vdwg.mxu0
    %210 = vrot.lane.b32.xlu0 %v140, 120
    %v211 = vpop.permute.xlu0 %210
    %212 = vrot.lane.b32.xlu0 %v140, 88
    %v213 = vpop.permute.xlu0 %212
    %v215 = vsel %vm143, %v211, 0
    %v218 = vsel %vm143, %v213, 0
    %220 = vmatpush.bf16.xpose.msra.mxu0 0
    %221 = vmatpush.bf16.xpose.msra.mxu0 0
    %222 = vmatpush.bf16.xpose.msra.mxu0 0
    %223 = vmatpush.bf16.xpose.msra.mxu0 0
    %224 = vmatpush.bf16.xpose.msra.mxu0 0
    %225 = vmatpush.bf16.xpose.msra.mxu0 0
    %226 = vmatpush.bf16.xpose.msra.mxu0 0
    %227 = vmatpush.bf16.xpose.msra.mxu0 %v218
    %228 = vmatmul.bf16.gmra.mxu0 %v215
    %v229 = vpop.f32.mrf.mxu0
    %v230 = vadd.f32 0.0, %v229
    %v231 = vpop.f32.mrf.mxu0
    %v232 = vadd.f32 0.0, %v231
    %233 = vdwg.mxu0
    %v234 = vsel %vm134, %v230, -1e+30
    %v235 = vsel %vm135, %v232, -1e+30
    %v236 = vsel %vm166, %v234, -inf
    %237 = vmax.xlane.f32.xlu0 %v236
    %v238 = vpop.xlane.xlu0 %237
    %v239 = vsel %vm166, %v235, -inf
    %240 = vmax.xlane.f32.xlu0 %v239
    %v241 = vpop.xlane.xlu0 %240
    %v242 = vsub.f32 %v234, %v238
    %v243 = vsub.f32 %v235, %v241
    %v244 = vmul.f32 %v242, 1.442695
    %v245 = vpow.pop %v244
    %v246 = vmul.f32 %v243, 1.442695
    %v247 = vpow.pop %v246
    %v248 = vsel %vm166, %v245, 0.0
    %249 = vadd.xlane.f32.xlu0 %v248
    %v250 = vpop.xlane.xlu0 %249
    %v251 = vsel %vm166, %v247, 0.0
    %252 = vadd.xlane.f32.xlu0 %v251
    %v253 = vpop.xlane.xlu0 %252
    %v254 = vrcp.pop %v250
    %v255 = vrcp.pop %v253
    %v256 = vmul.f32 %v245, %v254
    %v257 = vmul.f32 %v247, %v255
    %v258 = vpack.c.bf16 %v257, %v256
    %259 = vrot.lane.b32.xlu0 %v140, 56
    %v260 = vpop.permute.xlu0 %259
    %v263 = vsel %vm166, %v258, 0
    %265 = vmatpush.bf16.msra.mxu0 0
    %266 = vmatpush.bf16.msra.mxu0 0
    %267 = vmatpush.bf16.msra.mxu0 0
    %268 = vmatpush.bf16.msra.mxu0 0
    %269 = vmatpush.bf16.msra.mxu0 0
    %270 = vmatpush.bf16.msra.mxu0 0
    %271 = vmatpush.bf16.msra.mxu0 0
    %272 = vmatpush.bf16.msra.mxu0 %v260
    %273 = vmatmul.bf16.gmra.mxu0 %v263
    %v274 = vpop.f32.mrf.mxu0
    %v275 = vadd.f32 0.0, %v274
    %v276 = vpop.f32.mrf.mxu0
    %v277 = vadd.f32 0.0, %v276
    %278 = vdwg.mxu0
    %279 = vrot.lane.b32.xlu0 %v140, 112
    %v280 = vpop.permute.xlu0 %279
    %281 = vrot.lane.b32.xlu0 %v140, 80
    %v282 = vpop.permute.xlu0 %281
    %v284 = vsel %vm143, %v280, 0
    %v287 = vsel %vm143, %v282, 0
    %289 = vmatpush.bf16.xpose.msra.mxu0 0
    %290 = vmatpush.bf16.xpose.msra.mxu0 0
    %291 = vmatpush.bf16.xpose.msra.mxu0 0
    %292 = vmatpush.bf16.xpose.msra.mxu0 0
    %293 = vmatpush.bf16.xpose.msra.mxu0 0
    %294 = vmatpush.bf16.xpose.msra.mxu0 0
    %295 = vmatpush.bf16.xpose.msra.mxu0 0
    %296 = vmatpush.bf16.xpose.msra.mxu0 %v287
    %297 = vmatmul.bf16.gmra.mxu0 %v284
    %v298 = vpop.f32.mrf.mxu0
    %v299 = vadd.f32 0.0, %v298
    %v300 = vpop.f32.mrf.mxu0
    %v301 = vadd.f32 0.0, %v300
    %302 = vdwg.mxu0
    %v303 = vsel %vm134, %v299, -1e+30
    %v304 = vsel %vm135, %v301, -1e+30
    %v305 = vsel %vm166, %v303, -inf
    %306 = vmax.xlane.f32.xlu0 %v305
    %v307 = vpop.xlane.xlu0 %306
    %v308 = vsel %vm166, %v304, -inf
    %309 = vmax.xlane.f32.xlu0 %v308
    %v310 = vpop.xlane.xlu0 %309
    %v311 = vsub.f32 %v303, %v307
    %v312 = vsub.f32 %v304, %v310
    %v313 = vmul.f32 %v311, 1.442695
    %v314 = vpow.pop %v313
    %v315 = vmul.f32 %v312, 1.442695
    %v316 = vpow.pop %v315
    %v317 = vsel %vm166, %v314, 0.0
    %318 = vadd.xlane.f32.xlu0 %v317
    %v319 = vpop.xlane.xlu0 %318
    %v320 = vsel %vm166, %v316, 0.0
    %321 = vadd.xlane.f32.xlu0 %v320
    %v322 = vpop.xlane.xlu0 %321
    %v323 = vrcp.pop %v319
    %v324 = vrcp.pop %v322
    %v325 = vmul.f32 %v314, %v323
    %v326 = vmul.f32 %v316, %v324
    %v327 = vpack.c.bf16 %v326, %v325
    %328 = vrot.lane.b32.xlu0 %v140, 48
    %v329 = vpop.permute.xlu0 %328
    %v332 = vsel %vm166, %v327, 0
    %334 = vmatpush.bf16.msra.mxu0 0
    %335 = vmatpush.bf16.msra.mxu0 0
    %336 = vmatpush.bf16.msra.mxu0 0
    %337 = vmatpush.bf16.msra.mxu0 0
    %338 = vmatpush.bf16.msra.mxu0 0
    %339 = vmatpush.bf16.msra.mxu0 0
    %340 = vmatpush.bf16.msra.mxu0 0
    %341 = vmatpush.bf16.msra.mxu0 %v329
    %342 = vmatmul.bf16.gmra.mxu0 %v332
    %v343 = vpop.f32.mrf.mxu0
    %v344 = vadd.f32 0.0, %v343
    %v345 = vpop.f32.mrf.mxu0
    %v346 = vadd.f32 0.0, %v345
    %347 = vdwg.mxu0
    %348 = vrot.lane.b32.xlu0 %v140, 104
    %v349 = vpop.permute.xlu0 %348
    %350 = vrot.lane.b32.xlu0 %v140, 72
    %v351 = vpop.permute.xlu0 %350
    %v353 = vsel %vm143, %v349, 0
    %v356 = vsel %vm143, %v351, 0
    %358 = vmatpush.bf16.xpose.msra.mxu0 0
    %359 = vmatpush.bf16.xpose.msra.mxu0 0
    %360 = vmatpush.bf16.xpose.msra.mxu0 0
    %361 = vmatpush.bf16.xpose.msra.mxu0 0
    %362 = vmatpush.bf16.xpose.msra.mxu0 0
    %363 = vmatpush.bf16.xpose.msra.mxu0 0
    %364 = vmatpush.bf16.xpose.msra.mxu0 0
    %365 = vmatpush.bf16.xpose.msra.mxu0 %v356
    %366 = vmatmul.bf16.gmra.mxu0 %v353
    %v367 = vpop.f32.mrf.mxu0
    %v368 = vadd.f32 0.0, %v367
    %v369 = vpop.f32.mrf.mxu0
    %v370 = vadd.f32 0.0, %v369
    %371 = vdwg.mxu0
    %v372 = vsel %vm134, %v368, -1e+30
    %v373 = vsel %vm135, %v370, -1e+30
    %v374 = vsel %vm166, %v372, -inf
    %375 = vmax.xlane.f32.xlu0 %v374
    %v376 = vpop.xlane.xlu0 %375
    %v377 = vsel %vm166, %v373, -inf
    %378 = vmax.xlane.f32.xlu0 %v377
    %v379 = vpop.xlane.xlu0 %378
    %v380 = vsub.f32 %v372, %v376
    %v381 = vsub.f32 %v373, %v379
    %v382 = vmul.f32 %v380, 1.442695
    %v383 = vpow.pop %v382
    %v384 = vmul.f32 %v381, 1.442695
    %v385 = vpow.pop %v384
    %v386 = vsel %vm166, %v383, 0.0
    %387 = vadd.xlane.f32.xlu0 %v386
    %v388 = vpop.xlane.xlu0 %387
    %v389 = vsel %vm166, %v385, 0.0
    %390 = vadd.xlane.f32.xlu0 %v389
    %v391 = vpop.xlane.xlu0 %390
    %v392 = vrcp.pop %v388
    %v393 = vrcp.pop %v391
    %v394 = vmul.f32 %v383, %v392
    %v395 = vmul.f32 %v385, %v393
    %v396 = vpack.c.bf16 %v395, %v394
    %397 = vrot.lane.b32.xlu0 %v140, 40
    %v398 = vpop.permute.xlu0 %397
    %v401 = vsel %vm166, %v396, 0
    %403 = vmatpush.bf16.msra.mxu0 0
    %404 = vmatpush.bf16.msra.mxu0 0
    %405 = vmatpush.bf16.msra.mxu0 0
    %406 = vmatpush.bf16.msra.mxu0 0
    %407 = vmatpush.bf16.msra.mxu0 0
    %408 = vmatpush.bf16.msra.mxu0 0
    %409 = vmatpush.bf16.msra.mxu0 0
    %410 = vmatpush.bf16.msra.mxu0 %v398
    %411 = vmatmul.bf16.gmra.mxu0 %v401
    %v412 = vpop.f32.mrf.mxu0
    %v413 = vadd.f32 0.0, %v412
    %v414 = vpop.f32.mrf.mxu0
    %v415 = vadd.f32 0.0, %v414
    %416 = vdwg.mxu0
    %419 = vrot.lane.b32.xlu0 %v275, 8
    %v420 = vpop.permute.xlu0 %419
    %421 = vrot.lane.b32.xlu0 %v277, 8
    %v422 = vpop.permute.xlu0 %421
    %427 = vrot.lane.b32.xlu0 %v344, 16
    %v428 = vpop.permute.xlu0 %427
    %429 = vrot.lane.b32.xlu0 %v346, 16
    %v430 = vpop.permute.xlu0 %429
    %435 = vrot.lane.b32.xlu0 %v413, 24
    %v436 = vpop.permute.xlu0 %435
    %437 = vrot.lane.b32.xlu0 %v415, 24
    %v438 = vpop.permute.xlu0 %437
    %v441 = vsel %vm143, %v206, %v420
    %v442 = vsel %vm143, %v208, %v422
    %v443 = vsel %vm166, %v441, %v428
    %v444 = vsel %vm166, %v442, %v430
    %vm445 = vcmask 195584
    %v446 = vsel %vm445, %v443, %v436
    %v447 = vsel %vm445, %v444, %v438
    %v448 = vpack.c.bf16 %v447, %v446
    %v449 = vld [vmem:[%s3] sm:$0xf]
    %v450 = vld [vmem:[%s3 + $0x4] sm:$0xf]
    %v451 = vld [vmem:[%s3 + $0x8] sm:$0xf]
    %v452 = vld [vmem:[%s3 + $0xc] sm:$0xf]
    %v454 = vperm.slane %v92, 0
    %v460 = vunpack.c.l.b16 %v449
    %v461 = vunpack.c.l.b16 %v450
    %v462 = vunpack.c.l.b16 %v451
    %v463 = vunpack.c.l.b16 %v452
    %v464 = vpack.c.b16 %v461, %v460
    %v465 = vpack.c.b16 %v463, %v462
    %v469 = vsel %vm72, %v448, 0
    %471 = vmatpush.bf16.msra.mxu0 0
    %472 = vmatpush.bf16.msra.mxu0 0
    %473 = vmatpush.bf16.msra.mxu0 0
    %474 = vmatpush.bf16.msra.mxu0 0
    %475 = vmatpush.bf16.msra.mxu0 0
    %476 = vmatpush.bf16.msra.mxu0 0
    %477 = vmatpush.bf16.msra.mxu0 %v465
    %478 = vmatpush.bf16.msra.mxu0 %v464
    %479 = vmatmul.bf16.gmra.mxu0 %v469
    %v480 = vpop.f32.mrf.mxu0
    %v481 = vadd.f32 %v454, %v480
    %v482 = vpop.f32.mrf.mxu0
    %v483 = vadd.f32 %v454, %v482
    %484 = vdwg.mxu0
    %v485 = vstv %s51
    %v486 = vmul.f32 %v485, %v481
    %v487 = vmul.f32 %v485, %v483
    %v488 = vadd.f32 %v48, %v486
    %v489 = vadd.f32 %v49, %v487
    %v490 = vpack.c.bf16 %v489, %v488
    %v491 = vld [vmem:[#allocation3] sm:$0xf]
    %v492 = vld [vmem:[#allocation3 + $0x4] sm:$0xf]
    %v493 = vld [vmem:[#allocation3 + $0x8] sm:$0xf]
    %v494 = vld [vmem:[#allocation3 + $0xc] sm:$0xf]
    %v499 = vunpack.c.l.b16 %v491
    %v500 = vunpack.c.l.b16 %v492
    %v501 = vunpack.c.l.b16 %v493
    %v502 = vunpack.c.l.b16 %v494
    %v503 = vpack.c.b16 %v500, %v499
    %v504 = vpack.c.b16 %v502, %v501
    %507 = vrot.lane.b32.xlu0 %v454, 96
    %v508 = vpop.permute.xlu0 %507
    %v511 = vsel %vm72, %v490, 0
    %513 = vmatpush.bf16.msra.mxu0 0
    %514 = vmatpush.bf16.msra.mxu0 0
    %515 = vmatpush.bf16.msra.mxu0 0
    %516 = vmatpush.bf16.msra.mxu0 0
    %517 = vmatpush.bf16.msra.mxu0 0
    %518 = vmatpush.bf16.msra.mxu0 0
    %519 = vmatpush.bf16.msra.mxu0 %v504
    %520 = vmatpush.bf16.msra.mxu0 %v503
    %521 = vmatmul.bf16.gmra.mxu0 %v511
    %v522 = vpop.f32.mrf.mxu0
    %v523 = vadd.f32 %v508, %v522
    %v524 = vpop.f32.mrf.mxu0
    %v525 = vadd.f32 %v508, %v524
    %526 = vdwg.mxu0
    %v527 = vmax.f32 %v523, 0.0
    %v528 = vmax.f32 %v525, 0.0
    %v529 = vpack.c.bf16 %v528, %v527
    %v530 = vld [vmem:[%s6] sm:$0xf]
    %v531 = vld [vmem:[%s6 + $0x4] sm:$0xf]
    %v532 = vld [vmem:[%s6 + $0x8] sm:$0xf]
    %v533 = vld [vmem:[%s6 + $0xc] sm:$0xf]
    %v534 = vld [vmem:[%s6 + $0x10] sm:$0xf]
    %v535 = vld [vmem:[%s6 + $0x14] sm:$0xf]
    %v536 = vld [vmem:[%s6 + $0x18] sm:$0xf]
    %v537 = vld [vmem:[%s6 + $0x1c] sm:$0xf]
    %v546 = vunpack.c.l.b16 %v530
    %v547 = vunpack.c.l.b16 %v531
    %v548 = vunpack.c.l.b16 %v532
    %v549 = vunpack.c.l.b16 %v533
    %v550 = vunpack.c.l.b16 %v534
    %v551 = vunpack.c.l.b16 %v535
    %v552 = vunpack.c.l.b16 %v536
    %v553 = vunpack.c.l.b16 %v537
    %v554 = vpack.c.b16 %v547, %v546
    %v555 = vpack.c.b16 %v549, %v548
    %v556 = vpack.c.b16 %v551, %v550
    %v557 = vpack.c.b16 %v553, %v552
    %562 = vrot.lane.b32.xlu0 %v454, 32
    %v563 = vpop.permute.xlu0 %562
    %vm565 = vcmask 523264
    %v567 = vsel %vm565, %v529, 0
    %569 = vmatpush.bf16.msra.mxu0 0
    %570 = vmatpush.bf16.msra.mxu0 0
    %571 = vmatpush.bf16.msra.mxu0 0
    %572 = vmatpush.bf16.msra.mxu0 0
    %573 = vmatpush.bf16.msra.mxu0 %v557
    %574 = vmatpush.bf16.msra.mxu0 %v556
    %575 = vmatpush.bf16.msra.mxu0 %v555
    %576 = vmatpush.bf16.msra.mxu0 %v554
    %577 = vmatmul.bf16.gmra.mxu0 %v567
    %v578 = vpop.f32.mrf.mxu0
    %v579 = vadd.f32 %v563, %v578
    %v580 = vpop.f32.mrf.mxu0
    %v581 = vadd.f32 %v563, %v580
    %582 = vdwg.mxu0
    %v583 = vmul.f32 %v485, %v579
    %v584 = vmul.f32 %v485, %v581
    %v585 = vadd.f32 %v488, %v583
    %v586 = vadd.f32 %v489, %v584
    %587 = vst.msk [vmem:[#allocation6] sm:$0xff] %vm72, %v585
    %588 = vst.msk [vmem:[#allocation6 + $0x8] sm:$0xff] %vm72, %v586
    // Predicated region
    $region38: #{tpu_custom_call.1} parent=1 // pred_check
      _
    $region39: #{tpu_custom_call.1} parent=1 // pred_check_branch
      %590 = sbr.rel (0) target = $region41
    $region40: #{tpu_custom_call.1} parent=1 // pred_region
      %592 = vsyncadd [#allocation5], 0
      %s593 = sshll.u32 [#allocation6], 4
      %s594 = int_to_ptr.vmem [resolvable:$true] %s593
      %s595 = sshll.u32 %s8, 4
      %s596 = int_to_ptr.hbm [resolvable:$true] %s595
      %601 = dma.vmem_to_hbm [thread:$0]  %s594, 256, %s596, [#allocation5], 128, 128, 8
    $region41: #{tpu_custom_call.1} parent=1 // pred_fallthru
      _
    // Predicated region
    $region42: #{tpu_custom_call.1} parent=1 // pred_check
      _
    $region43: #{tpu_custom_call.1} parent=1 // pred_check_branch
      %603 = sbr.rel (0) target = $region45
    $region44: #{tpu_custom_call.1} parent=1 // pred_region
      %605 = dma.done [#allocation5], 256
    $region45: #{tpu_custom_call.1} parent=1 // pred_fallthru
      _
    %606 = vsyncpa [#allocation4], 1
    %607 = vsyncpa [#allocation5], 1

</llo_original>
